<compile_context>
chip_gen: v5e
topology: v5e:2x2
jax: 0.10.0
libtpu: 0.0.40
codegen_flags: <defaults>
</compile_context>

<pallas_src>
import jax
import jax.numpy as jnp
from jax.experimental import pallas as pl
from jax.experimental.pallas import tpu as pltpu


# Conservative budget for the six (bb, D) gather buffers: fits comfortably inside
# v7x's 64 MiB physical VMEM (and trivially inside v5e/v6e's 128 MiB).
_GATHER_VMEM_BUDGET = 24 << 20


def _round_up(x, m):
    return ((x + m - 1) // m) * m


def _complex_score_kernel(
    e1_idx, rel_idx, e2_idx,                              # scalar prefetch (SMEM)
    e_real_hbm, e_img_hbm, rel_real_hbm, rel_img_hbm,     # tables in HBM (pl.ANY)
    out_ref,                                              # (bb, 1) output block
    e1r_buf, e1i_buf, rr_buf, ri_buf, e2r_buf, e2i_buf,   # (bb, D) VMEM gather bufs
    sem,                                                  # (6,) DMA semaphores
):
    bb = out_ref.shape[0]
    base = pl.program_id(0) * bb

    def row_copies(r):
        row = base + r
        i1 = e1_idx[row]
        ir = rel_idx[row]
        i2 = e2_idx[row]
        return (
            pltpu.make_async_copy(e_real_hbm.at[i1], e1r_buf.at[r], sem.at[0]),
            pltpu.make_async_copy(e_img_hbm.at[i1], e1i_buf.at[r], sem.at[1]),
            pltpu.make_async_copy(rel_real_hbm.at[ir], rr_buf.at[r], sem.at[2]),
            pltpu.make_async_copy(rel_img_hbm.at[ir], ri_buf.at[r], sem.at[3]),
            pltpu.make_async_copy(e_real_hbm.at[i2], e2r_buf.at[r], sem.at[4]),
            pltpu.make_async_copy(e_img_hbm.at[i2], e2i_buf.at[r], sem.at[5]),
        )

    # Issue all row gathers for this batch block (6 DMA streams, one sem each).
    @pl.loop(0, bb)
    def _start(r):
        for cp in row_copies(r):
            cp.start()

    # Drain every issued copy before touching the buffers.  Waits just count
    # completions per semaphore, so after this loop all rows are resident.
    @pl.loop(0, bb)
    def _drain(r):
        for cp in row_copies(r):
            cp.wait()

    # Upcast to f32 (no-op for f32 tables; keeps bf16-stored tables v5e-safe).
    e1r = e1r_buf[...].astype(jnp.float32)
    e1i = e1i_buf[...].astype(jnp.float32)
    rr = rr_buf[...].astype(jnp.float32)
    ri = ri_buf[...].astype(jnp.float32)
    e2r = e2r_buf[...].astype(jnp.float32)
    e2i = e2i_buf[...].astype(jnp.float32)

    # Factored ComplEx tri-linear product: 6 multiplies + 3 adds (VPU elementwise).
    prod = e1r * (rr * e2r + ri * e2i) + e1i * (rr * e2i - ri * e2r)

    # Reduce over embedding dim (lanes) -> (bb, 1), sigmoid via EUP exp.
    score = jnp.sum(prod, axis=-1, keepdims=True)
    out_ref[...] = jax.nn.sigmoid(score)


def complex_forward(params, e1, rel, e2, *, batch_block=512):
    """ComplEx forward. e1, rel, e2: integer index vectors of shape (B,). Returns (B,) f32."""
    e_real = params["emb_e_real"]
    e_img = params["emb_e_img"]
    r_real = params["emb_rel_real"]
    r_img = params["emb_rel_img"]

    num_entities, D = e_real.shape
    assert e_img.shape == (num_entities, D)
    assert r_real.shape[1] == D and r_img.shape[1] == D

    B = e1.shape[0]
    itemsize = jnp.dtype(e_real.dtype).itemsize

    # Pick the batch tile: as requested (default 512 rows) but capped by the VMEM
    # budget for the six (bb, D) gather buffers (v7x has only 64 MiB VMEM).
    row_bytes = 6 * D * itemsize
    max_bb = max(8, ((_GATHER_VMEM_BUDGET // row_bytes) // 8) * 8)
    bb = min(_round_up(min(batch_block, _round_up(B, 8)), 8), max_bb)
    B_pad = _round_up(B, bb)
    pad = B_pad - B

    # Pad ragged batches with index 0 (rows are computed then sliced off).
    e1_p = jnp.pad(e1.astype(jnp.int32), (0, pad))
    rel_p = jnp.pad(rel.astype(jnp.int32), (0, pad))
    e2_p = jnp.pad(e2.astype(jnp.int32), (0, pad))

    # Scoped VMEM: gather buffers + tiny output double-buffer + headroom,
    # always kept below v7x's 64 MiB physical VMEM.
    needed = 6 * bb * D * itemsize + 4 * bb * 4 + (2 << 20)
    vmem_limit = int(min(max(needed, 32 << 20), 48 << 20))

    out = pl.pallas_call(
        _complex_score_kernel,
        out_shape=jax.ShapeDtypeStruct((B_pad, 1), jnp.float32),
        grid_spec=pltpu.PrefetchScalarGridSpec(
            num_scalar_prefetch=3,
            grid=(B_pad // bb,),
            in_specs=[pl.BlockSpec(memory_space=pl.ANY)] * 4,   # tables stay in HBM
            out_specs=pl.BlockSpec((bb, 1), lambda b, e1_r, rel_r, e2_r: (b, 0)),
            scratch_shapes=[pltpu.VMEM((bb, D), e_real.dtype) for _ in range(6)]
                           + [pltpu.SemaphoreType.DMA((6,))],
        ),
        compiler_params=pltpu.CompilerParams(
            dimension_semantics=("parallel",),   # shard batch blocks across TCs
            vmem_limit_bytes=vmem_limit,
        ),
    )(e1_p, rel_p, e2_p, e_real, e_img, r_real, r_img)

    # torch: pred.squeeze() on (B,1,1) -> (B,)
    return out[:B, 0]


def init_params(key, num_entities, num_relations, embedding_dim, dtype=jnp.float32):
    """xavier_normal init (gain=1): std = sqrt(2 / (fan_in + fan_out)).

    For best TPU efficiency choose embedding_dim as a multiple of 128 (lane-full
    vregs and full-width row DMAs); bf16 `dtype` halves HBM gather traffic.
    """
    k1, k2, k3, k4 = jax.random.split(key, 4)

    def xavier(k, n, d):
        std = (2.0 / (n + d)) ** 0.5
        return (std * jax.random.normal(k, (n, d), dtype=jnp.float32)).astype(dtype)

    return {
        "emb_e_real": xavier(k1, num_entities, embedding_dim),
        "emb_e_img": xavier(k2, num_entities, embedding_dim),
        "emb_rel_real": xavier(k3, num_relations, embedding_dim),
        "emb_rel_img": xavier(k4, num_relations, embedding_dim),
    }


def _reference(params, e1, rel, e2):
    e1r = params["emb_e_real"][e1].astype(jnp.float32)
    e1i = params["emb_e_img"][e1].astype(jnp.float32)
    rr = params["emb_rel_real"][rel].astype(jnp.float32)
    ri = params["emb_rel_img"][rel].astype(jnp.float32)
    e2r = params["emb_e_real"][e2].astype(jnp.float32)
    e2i = params["emb_e_img"][e2].astype(jnp.float32)
    s = jnp.sum(e1r * rr * e2r + e1r * ri * e2i + e1i * rr * e2i - e1i * ri * e2r, axis=-1)
    return jax.nn.sigmoid(s)


if __name__ == "__main__":
    num_entities, num_relations, embedding_dim = 64, 16, 128   # D multiple of 128
    batch = 8

    key = jax.random.PRNGKey(0)
    kp, k1, k2, k3 = jax.random.split(key, 4)
    params = init_params(kp, num_entities, num_relations, embedding_dim)

    e1 = jax.random.randint(k1, (batch,), 0, num_entities, dtype=jnp.int32)
    rel = jax.random.randint(k2, (batch,), 0, num_relations, dtype=jnp.int32)
    e2 = jax.random.randint(k3, (batch,), 0, num_entities, dtype=jnp.int32)

    pred = complex_forward(params, e1, rel, e2)
    pred = jax.block_until_ready(pred)

    ref = _reference(params, e1, rel, e2)
    assert pred.shape == (batch,)
    assert jnp.allclose(pred, ref, atol=1e-5, rtol=1e-5), (pred, ref)

    print("KERNEL_OK")
</pallas_src>

<mosaic_0001>
module attributes {stable_mosaic.version = 11 : i64} {
  func.func @_complex_score_kernel(%arg0: i32, %arg1: memref<8xi32, #tpu.memory_space<smem>>, %arg2: memref<8xi32, #tpu.memory_space<smem>>, %arg3: memref<8xi32, #tpu.memory_space<smem>>, %arg4: memref<64x128xf32, #tpu.memory_space<any>>, %arg5: memref<64x128xf32, #tpu.memory_space<any>>, %arg6: memref<16x128xf32, #tpu.memory_space<any>>, %arg7: memref<16x128xf32, #tpu.memory_space<any>>, %arg8: memref<8x1xf32, #tpu.memory_space<vmem>>, %arg9: memref<8x128xf32, #tpu.memory_space<vmem>>, %arg10: memref<8x128xf32, #tpu.memory_space<vmem>>, %arg11: memref<8x128xf32, #tpu.memory_space<vmem>>, %arg12: memref<8x128xf32, #tpu.memory_space<vmem>>, %arg13: memref<8x128xf32, #tpu.memory_space<vmem>>, %arg14: memref<8x128xf32, #tpu.memory_space<vmem>>, %arg15: memref<6x!tpu.dma_semaphore, #tpu.memory_space<semaphore_mem>>) attributes {dimension_semantics = [#tpu.dimension_semantics<parallel>], iteration_bounds = array<i64: 1>, scalar_prefetch = 3 : i64, scratch_operands = 7 : i64, tpu.core_type = #tpu.core_type<tc>, window_params = [{}, {}, {}, {}, {transform_indices = @transform_4, window_bounds = array<i64: 8, 1>}]} {
    %c8_i32 = arith.constant 8 : i32
    %0 = arith.muli %arg0, %c8_i32 : i32
    %c0_i32 = arith.constant 0 : i32
    %c8_i32_0 = arith.constant 8 : i32
    %1 = arith.addi %c0_i32, %c8_i32_0 : i32
    %c1_i32 = arith.constant 1 : i32
    scf.for %arg16 = %c0_i32 to %1 step %c1_i32  : i32 {
      %c1_i32_20 = arith.constant 1 : i32
      %26 = arith.muli %arg16, %c1_i32_20 : i32
      %c0_i32_21 = arith.constant 0 : i32
      %27 = arith.addi %c0_i32_21, %26 : i32
      %28 = arith.addi %0, %27 : i32
      %29 = arith.index_cast %28 : i32 to index
      %30 = memref.load %arg1[%29] : memref<8xi32, #tpu.memory_space<smem>>
      %31 = arith.index_cast %28 : i32 to index
      %32 = memref.load %arg2[%31] : memref<8xi32, #tpu.memory_space<smem>>
      %33 = arith.index_cast %28 : i32 to index
      %34 = memref.load %arg3[%33] : memref<8xi32, #tpu.memory_space<smem>>
      %c0_i32_22 = arith.constant 0 : i32
      %c0_i32_23 = arith.constant 0 : i32
      %35 = tpu.memref_slice %arg4[%30, %c0_i32_23] : memref<64x128xf32, #tpu.memory_space<any>> -> memref<1x128xf32, #tpu.memory_space<any>>
      %36 = tpu.memref_squeeze %35 : memref<1x128xf32, #tpu.memory_space<any>> -> memref<128xf32, #tpu.memory_space<any>>
      %c0_i32_24 = arith.constant 0 : i32
      %37 = tpu.memref_slice %arg9[%27, %c0_i32_24] : memref<8x128xf32, #tpu.memory_space<vmem>> -> memref<1x128xf32, #tpu.memory_space<vmem>>
      %38 = tpu.memref_squeeze %37 : memref<1x128xf32, #tpu.memory_space<vmem>> -> memref<128xf32, #tpu.memory_space<vmem>>
      %39 = tpu.memref_slice %arg15[%c0_i32_22] : memref<6x!tpu.dma_semaphore, #tpu.memory_space<semaphore_mem>> -> memref<1x!tpu.dma_semaphore, #tpu.memory_space<semaphore_mem>>
      %40 = tpu.memref_squeeze %39 : memref<1x!tpu.dma_semaphore, #tpu.memory_space<semaphore_mem>> -> memref<!tpu.dma_semaphore, #tpu.memory_space<semaphore_mem>>
      tpu.enqueue_dma source(%36 : memref<128xf32, #tpu.memory_space<any>>) target(%38 : memref<128xf32, #tpu.memory_space<vmem>>) target_semaphore(%40 : memref<!tpu.dma_semaphore, #tpu.memory_space<semaphore_mem>>)
      %c1_i32_25 = arith.constant 1 : i32
      %c0_i32_26 = arith.constant 0 : i32
      %41 = tpu.memref_slice %arg5[%30, %c0_i32_26] : memref<64x128xf32, #tpu.memory_space<any>> -> memref<1x128xf32, #tpu.memory_space<any>>
      %42 = tpu.memref_squeeze %41 : memref<1x128xf32, #tpu.memory_space<any>> -> memref<128xf32, #tpu.memory_space<any>>
      %c0_i32_27 = arith.constant 0 : i32
      %43 = tpu.memref_slice %arg10[%27, %c0_i32_27] : memref<8x128xf32, #tpu.memory_space<vmem>> -> memref<1x128xf32, #tpu.memory_space<vmem>>
      %44 = tpu.memref_squeeze %43 : memref<1x128xf32, #tpu.memory_space<vmem>> -> memref<128xf32, #tpu.memory_space<vmem>>
      %45 = tpu.memref_slice %arg15[%c1_i32_25] : memref<6x!tpu.dma_semaphore, #tpu.memory_space<semaphore_mem>> -> memref<1x!tpu.dma_semaphore, #tpu.memory_space<semaphore_mem>>
      %46 = tpu.memref_squeeze %45 : memref<1x!tpu.dma_semaphore, #tpu.memory_space<semaphore_mem>> -> memref<!tpu.dma_semaphore, #tpu.memory_space<semaphore_mem>>
      tpu.enqueue_dma source(%42 : memref<128xf32, #tpu.memory_space<any>>) target(%44 : memref<128xf32, #tpu.memory_space<vmem>>) target_semaphore(%46 : memref<!tpu.dma_semaphore, #tpu.memory_space<semaphore_mem>>)
      %c2_i32 = arith.constant 2 : i32
      %c0_i32_28 = arith.constant 0 : i32
      %47 = tpu.memref_slice %arg6[%32, %c0_i32_28] : memref<16x128xf32, #tpu.memory_space<any>> -> memref<1x128xf32, #tpu.memory_space<any>>
      %48 = tpu.memref_squeeze %47 : memref<1x128xf32, #tpu.memory_space<any>> -> memref<128xf32, #tpu.memory_space<any>>
      %c0_i32_29 = arith.constant 0 : i32
      %49 = tpu.memref_slice %arg11[%27, %c0_i32_29] : memref<8x128xf32, #tpu.memory_space<vmem>> -> memref<1x128xf32, #tpu.memory_space<vmem>>
      %50 = tpu.memref_squeeze %49 : memref<1x128xf32, #tpu.memory_space<vmem>> -> memref<128xf32, #tpu.memory_space<vmem>>
      %51 = tpu.memref_slice %arg15[%c2_i32] : memref<6x!tpu.dma_semaphore, #tpu.memory_space<semaphore_mem>> -> memref<1x!tpu.dma_semaphore, #tpu.memory_space<semaphore_mem>>
      %52 = tpu.memref_squeeze %51 : memref<1x!tpu.dma_semaphore, #tpu.memory_space<semaphore_mem>> -> memref<!tpu.dma_semaphore, #tpu.memory_space<semaphore_mem>>
      tpu.enqueue_dma source(%48 : memref<128xf32, #tpu.memory_space<any>>) target(%50 : memref<128xf32, #tpu.memory_space<vmem>>) target_semaphore(%52 : memref<!tpu.dma_semaphore, #tpu.memory_space<semaphore_mem>>)
      %c3_i32 = arith.constant 3 : i32
      %c0_i32_30 = arith.constant 0 : i32
      %53 = tpu.memref_slice %arg7[%32, %c0_i32_30] : memref<16x128xf32, #tpu.memory_space<any>> -> memref<1x128xf32, #tpu.memory_space<any>>
      %54 = tpu.memref_squeeze %53 : memref<1x128xf32, #tpu.memory_space<any>> -> memref<128xf32, #tpu.memory_space<any>>
      %c0_i32_31 = arith.constant 0 : i32
      %55 = tpu.memref_slice %arg12[%27, %c0_i32_31] : memref<8x128xf32, #tpu.memory_space<vmem>> -> memref<1x128xf32, #tpu.memory_space<vmem>>
      %56 = tpu.memref_squeeze %55 : memref<1x128xf32, #tpu.memory_space<vmem>> -> memref<128xf32, #tpu.memory_space<vmem>>
      %57 = tpu.memref_slice %arg15[%c3_i32] : memref<6x!tpu.dma_semaphore, #tpu.memory_space<semaphore_mem>> -> memref<1x!tpu.dma_semaphore, #tpu.memory_space<semaphore_mem>>
      %58 = tpu.memref_squeeze %57 : memref<1x!tpu.dma_semaphore, #tpu.memory_space<semaphore_mem>> -> memref<!tpu.dma_semaphore, #tpu.memory_space<semaphore_mem>>
      tpu.enqueue_dma source(%54 : memref<128xf32, #tpu.memory_space<any>>) target(%56 : memref<128xf32, #tpu.memory_space<vmem>>) target_semaphore(%58 : memref<!tpu.dma_semaphore, #tpu.memory_space<semaphore_mem>>)
      %c4_i32 = arith.constant 4 : i32
      %c0_i32_32 = arith.constant 0 : i32
      %59 = tpu.memref_slice %arg4[%34, %c0_i32_32] : memref<64x128xf32, #tpu.memory_space<any>> -> memref<1x128xf32, #tpu.memory_space<any>>
      %60 = tpu.memref_squeeze %59 : memref<1x128xf32, #tpu.memory_space<any>> -> memref<128xf32, #tpu.memory_space<any>>
      %c0_i32_33 = arith.constant 0 : i32
      %61 = tpu.memref_slice %arg13[%27, %c0_i32_33] : memref<8x128xf32, #tpu.memory_space<vmem>> -> memref<1x128xf32, #tpu.memory_space<vmem>>
      %62 = tpu.memref_squeeze %61 : memref<1x128xf32, #tpu.memory_space<vmem>> -> memref<128xf32, #tpu.memory_space<vmem>>
      %63 = tpu.memref_slice %arg15[%c4_i32] : memref<6x!tpu.dma_semaphore, #tpu.memory_space<semaphore_mem>> -> memref<1x!tpu.dma_semaphore, #tpu.memory_space<semaphore_mem>>
      %64 = tpu.memref_squeeze %63 : memref<1x!tpu.dma_semaphore, #tpu.memory_space<semaphore_mem>> -> memref<!tpu.dma_semaphore, #tpu.memory_space<semaphore_mem>>
      tpu.enqueue_dma source(%60 : memref<128xf32, #tpu.memory_space<any>>) target(%62 : memref<128xf32, #tpu.memory_space<vmem>>) target_semaphore(%64 : memref<!tpu.dma_semaphore, #tpu.memory_space<semaphore_mem>>)
      %c5_i32 = arith.constant 5 : i32
      %c0_i32_34 = arith.constant 0 : i32
      %65 = tpu.memref_slice %arg5[%34, %c0_i32_34] : memref<64x128xf32, #tpu.memory_space<any>> -> memref<1x128xf32, #tpu.memory_space<any>>
      %66 = tpu.memref_squeeze %65 : memref<1x128xf32, #tpu.memory_space<any>> -> memref<128xf32, #tpu.memory_space<any>>
      %c0_i32_35 = arith.constant 0 : i32
      %67 = tpu.memref_slice %arg14[%27, %c0_i32_35] : memref<8x128xf32, #tpu.memory_space<vmem>> -> memref<1x128xf32, #tpu.memory_space<vmem>>
      %68 = tpu.memref_squeeze %67 : memref<1x128xf32, #tpu.memory_space<vmem>> -> memref<128xf32, #tpu.memory_space<vmem>>
      %69 = tpu.memref_slice %arg15[%c5_i32] : memref<6x!tpu.dma_semaphore, #tpu.memory_space<semaphore_mem>> -> memref<1x!tpu.dma_semaphore, #tpu.memory_space<semaphore_mem>>
      %70 = tpu.memref_squeeze %69 : memref<1x!tpu.dma_semaphore, #tpu.memory_space<semaphore_mem>> -> memref<!tpu.dma_semaphore, #tpu.memory_space<semaphore_mem>>
      tpu.enqueue_dma source(%66 : memref<128xf32, #tpu.memory_space<any>>) target(%68 : memref<128xf32, #tpu.memory_space<vmem>>) target_semaphore(%70 : memref<!tpu.dma_semaphore, #tpu.memory_space<semaphore_mem>>)
    }
    %c8_i32_1 = arith.constant 8 : i32
    %c0_i32_2 = arith.constant 0 : i32
    %c8_i32_3 = arith.constant 8 : i32
    %2 = arith.addi %c0_i32_2, %c8_i32_3 : i32
    %c1_i32_4 = arith.constant 1 : i32
    scf.for %arg16 = %c0_i32_2 to %2 step %c1_i32_4  : i32 {
      %c1_i32_20 = arith.constant 1 : i32
      %26 = arith.muli %arg16, %c1_i32_20 : i32
      %c0_i32_21 = arith.constant 0 : i32
      %27 = arith.addi %c0_i32_21, %26 : i32
      %28 = arith.addi %0, %27 : i32
      %29 = arith.index_cast %28 : i32 to index
      %30 = memref.load %arg1[%29] : memref<8xi32, #tpu.memory_space<smem>>
      %31 = arith.index_cast %28 : i32 to index
      %32 = memref.load %arg2[%31] : memref<8xi32, #tpu.memory_space<smem>>
      %33 = arith.index_cast %28 : i32 to index
      %34 = memref.load %arg3[%33] : memref<8xi32, #tpu.memory_space<smem>>
      %c0_i32_22 = arith.constant 0 : i32
      %c0_i32_23 = arith.constant 0 : i32
      %35 = tpu.memref_slice %arg4[%30, %c0_i32_23] : memref<64x128xf32, #tpu.memory_space<any>> -> memref<1x128xf32, #tpu.memory_space<any>>
      %36 = tpu.memref_squeeze %35 : memref<1x128xf32, #tpu.memory_space<any>> -> memref<128xf32, #tpu.memory_space<any>>
      %c0_i32_24 = arith.constant 0 : i32
      %37 = tpu.memref_slice %arg9[%27, %c0_i32_24] : memref<8x128xf32, #tpu.memory_space<vmem>> -> memref<1x128xf32, #tpu.memory_space<vmem>>
      %38 = tpu.memref_squeeze %37 : memref<1x128xf32, #tpu.memory_space<vmem>> -> memref<128xf32, #tpu.memory_space<vmem>>
      %39 = tpu.memref_slice %arg15[%c0_i32_22] : memref<6x!tpu.dma_semaphore, #tpu.memory_space<semaphore_mem>> -> memref<1x!tpu.dma_semaphore, #tpu.memory_space<semaphore_mem>>
      %40 = tpu.memref_squeeze %39 : memref<1x!tpu.dma_semaphore, #tpu.memory_space<semaphore_mem>> -> memref<!tpu.dma_semaphore, #tpu.memory_space<semaphore_mem>>
      tpu.wait_dma2 semaphore(%40 : memref<!tpu.dma_semaphore, #tpu.memory_space<semaphore_mem>>) src(%36 : memref<128xf32, #tpu.memory_space<any>>) dst(%38 : memref<128xf32, #tpu.memory_space<vmem>>)
      %c1_i32_25 = arith.constant 1 : i32
      %c0_i32_26 = arith.constant 0 : i32
      %41 = tpu.memref_slice %arg5[%30, %c0_i32_26] : memref<64x128xf32, #tpu.memory_space<any>> -> memref<1x128xf32, #tpu.memory_space<any>>
      %42 = tpu.memref_squeeze %41 : memref<1x128xf32, #tpu.memory_space<any>> -> memref<128xf32, #tpu.memory_space<any>>
      %c0_i32_27 = arith.constant 0 : i32
      %43 = tpu.memref_slice %arg10[%27, %c0_i32_27] : memref<8x128xf32, #tpu.memory_space<vmem>> -> memref<1x128xf32, #tpu.memory_space<vmem>>
      %44 = tpu.memref_squeeze %43 : memref<1x128xf32, #tpu.memory_space<vmem>> -> memref<128xf32, #tpu.memory_space<vmem>>
      %45 = tpu.memref_slice %arg15[%c1_i32_25] : memref<6x!tpu.dma_semaphore, #tpu.memory_space<semaphore_mem>> -> memref<1x!tpu.dma_semaphore, #tpu.memory_space<semaphore_mem>>
      %46 = tpu.memref_squeeze %45 : memref<1x!tpu.dma_semaphore, #tpu.memory_space<semaphore_mem>> -> memref<!tpu.dma_semaphore, #tpu.memory_space<semaphore_mem>>
      tpu.wait_dma2 semaphore(%46 : memref<!tpu.dma_semaphore, #tpu.memory_space<semaphore_mem>>) src(%42 : memref<128xf32, #tpu.memory_space<any>>) dst(%44 : memref<128xf32, #tpu.memory_space<vmem>>)
      %c2_i32 = arith.constant 2 : i32
      %c0_i32_28 = arith.constant 0 : i32
      %47 = tpu.memref_slice %arg6[%32, %c0_i32_28] : memref<16x128xf32, #tpu.memory_space<any>> -> memref<1x128xf32, #tpu.memory_space<any>>
      %48 = tpu.memref_squeeze %47 : memref<1x128xf32, #tpu.memory_space<any>> -> memref<128xf32, #tpu.memory_space<any>>
      %c0_i32_29 = arith.constant 0 : i32
      %49 = tpu.memref_slice %arg11[%27, %c0_i32_29] : memref<8x128xf32, #tpu.memory_space<vmem>> -> memref<1x128xf32, #tpu.memory_space<vmem>>
      %50 = tpu.memref_squeeze %49 : memref<1x128xf32, #tpu.memory_space<vmem>> -> memref<128xf32, #tpu.memory_space<vmem>>
      %51 = tpu.memref_slice %arg15[%c2_i32] : memref<6x!tpu.dma_semaphore, #tpu.memory_space<semaphore_mem>> -> memref<1x!tpu.dma_semaphore, #tpu.memory_space<semaphore_mem>>
      %52 = tpu.memref_squeeze %51 : memref<1x!tpu.dma_semaphore, #tpu.memory_space<semaphore_mem>> -> memref<!tpu.dma_semaphore, #tpu.memory_space<semaphore_mem>>
      tpu.wait_dma2 semaphore(%52 : memref<!tpu.dma_semaphore, #tpu.memory_space<semaphore_mem>>) src(%48 : memref<128xf32, #tpu.memory_space<any>>) dst(%50 : memref<128xf32, #tpu.memory_space<vmem>>)
      %c3_i32 = arith.constant 3 : i32
      %c0_i32_30 = arith.constant 0 : i32
      %53 = tpu.memref_slice %arg7[%32, %c0_i32_30] : memref<16x128xf32, #tpu.memory_space<any>> -> memref<1x128xf32, #tpu.memory_space<any>>
      %54 = tpu.memref_squeeze %53 : memref<1x128xf32, #tpu.memory_space<any>> -> memref<128xf32, #tpu.memory_space<any>>
      %c0_i32_31 = arith.constant 0 : i32
      %55 = tpu.memref_slice %arg12[%27, %c0_i32_31] : memref<8x128xf32, #tpu.memory_space<vmem>> -> memref<1x128xf32, #tpu.memory_space<vmem>>
      %56 = tpu.memref_squeeze %55 : memref<1x128xf32, #tpu.memory_space<vmem>> -> memref<128xf32, #tpu.memory_space<vmem>>
      %57 = tpu.memref_slice %arg15[%c3_i32] : memref<6x!tpu.dma_semaphore, #tpu.memory_space<semaphore_mem>> -> memref<1x!tpu.dma_semaphore, #tpu.memory_space<semaphore_mem>>
      %58 = tpu.memref_squeeze %57 : memref<1x!tpu.dma_semaphore, #tpu.memory_space<semaphore_mem>> -> memref<!tpu.dma_semaphore, #tpu.memory_space<semaphore_mem>>
      tpu.wait_dma2 semaphore(%58 : memref<!tpu.dma_semaphore, #tpu.memory_space<semaphore_mem>>) src(%54 : memref<128xf32, #tpu.memory_space<any>>) dst(%56 : memref<128xf32, #tpu.memory_space<vmem>>)
      %c4_i32 = arith.constant 4 : i32
      %c0_i32_32 = arith.constant 0 : i32
      %59 = tpu.memref_slice %arg4[%34, %c0_i32_32] : memref<64x128xf32, #tpu.memory_space<any>> -> memref<1x128xf32, #tpu.memory_space<any>>
      %60 = tpu.memref_squeeze %59 : memref<1x128xf32, #tpu.memory_space<any>> -> memref<128xf32, #tpu.memory_space<any>>
      %c0_i32_33 = arith.constant 0 : i32
      %61 = tpu.memref_slice %arg13[%27, %c0_i32_33] : memref<8x128xf32, #tpu.memory_space<vmem>> -> memref<1x128xf32, #tpu.memory_space<vmem>>
      %62 = tpu.memref_squeeze %61 : memref<1x128xf32, #tpu.memory_space<vmem>> -> memref<128xf32, #tpu.memory_space<vmem>>
      %63 = tpu.memref_slice %arg15[%c4_i32] : memref<6x!tpu.dma_semaphore, #tpu.memory_space<semaphore_mem>> -> memref<1x!tpu.dma_semaphore, #tpu.memory_space<semaphore_mem>>
      %64 = tpu.memref_squeeze %63 : memref<1x!tpu.dma_semaphore, #tpu.memory_space<semaphore_mem>> -> memref<!tpu.dma_semaphore, #tpu.memory_space<semaphore_mem>>
      tpu.wait_dma2 semaphore(%64 : memref<!tpu.dma_semaphore, #tpu.memory_space<semaphore_mem>>) src(%60 : memref<128xf32, #tpu.memory_space<any>>) dst(%62 : memref<128xf32, #tpu.memory_space<vmem>>)
      %c5_i32 = arith.constant 5 : i32
      %c0_i32_34 = arith.constant 0 : i32
      %65 = tpu.memref_slice %arg5[%34, %c0_i32_34] : memref<64x128xf32, #tpu.memory_space<any>> -> memref<1x128xf32, #tpu.memory_space<any>>
      %66 = tpu.memref_squeeze %65 : memref<1x128xf32, #tpu.memory_space<any>> -> memref<128xf32, #tpu.memory_space<any>>
      %c0_i32_35 = arith.constant 0 : i32
      %67 = tpu.memref_slice %arg14[%27, %c0_i32_35] : memref<8x128xf32, #tpu.memory_space<vmem>> -> memref<1x128xf32, #tpu.memory_space<vmem>>
      %68 = tpu.memref_squeeze %67 : memref<1x128xf32, #tpu.memory_space<vmem>> -> memref<128xf32, #tpu.memory_space<vmem>>
      %69 = tpu.memref_slice %arg15[%c5_i32] : memref<6x!tpu.dma_semaphore, #tpu.memory_space<semaphore_mem>> -> memref<1x!tpu.dma_semaphore, #tpu.memory_space<semaphore_mem>>
      %70 = tpu.memref_squeeze %69 : memref<1x!tpu.dma_semaphore, #tpu.memory_space<semaphore_mem>> -> memref<!tpu.dma_semaphore, #tpu.memory_space<semaphore_mem>>
      tpu.wait_dma2 semaphore(%70 : memref<!tpu.dma_semaphore, #tpu.memory_space<semaphore_mem>>) src(%66 : memref<128xf32, #tpu.memory_space<any>>) dst(%68 : memref<128xf32, #tpu.memory_space<vmem>>)
    }
    %c8_i32_5 = arith.constant 8 : i32
    %c0 = arith.constant 0 : index
    %c0_6 = arith.constant 0 : index
    %3 = vector.load %arg9[%c0, %c0_6] : memref<8x128xf32, #tpu.memory_space<vmem>>, vector<8x128xf32>
    %c0_7 = arith.constant 0 : index
    %c0_8 = arith.constant 0 : index
    %4 = vector.load %arg10[%c0_7, %c0_8] : memref<8x128xf32, #tpu.memory_space<vmem>>, vector<8x128xf32>
    %c0_9 = arith.constant 0 : index
    %c0_10 = arith.constant 0 : index
    %5 = vector.load %arg11[%c0_9, %c0_10] : memref<8x128xf32, #tpu.memory_space<vmem>>, vector<8x128xf32>
    %c0_11 = arith.constant 0 : index
    %c0_12 = arith.constant 0 : index
    %6 = vector.load %arg12[%c0_11, %c0_12] : memref<8x128xf32, #tpu.memory_space<vmem>>, vector<8x128xf32>
    %c0_13 = arith.constant 0 : index
    %c0_14 = arith.constant 0 : index
    %7 = vector.load %arg13[%c0_13, %c0_14] : memref<8x128xf32, #tpu.memory_space<vmem>>, vector<8x128xf32>
    %c0_15 = arith.constant 0 : index
    %c0_16 = arith.constant 0 : index
    %8 = vector.load %arg14[%c0_15, %c0_16] : memref<8x128xf32, #tpu.memory_space<vmem>>, vector<8x128xf32>
    %9 = arith.mulf %5, %7 : vector<8x128xf32>
    %10 = arith.mulf %6, %8 : vector<8x128xf32>
    %11 = arith.addf %9, %10 : vector<8x128xf32>
    %12 = arith.mulf %3, %11 : vector<8x128xf32>
    %13 = arith.mulf %5, %8 : vector<8x128xf32>
    %14 = arith.mulf %6, %7 : vector<8x128xf32>
    %15 = arith.subf %13, %14 : vector<8x128xf32>
    %16 = arith.mulf %4, %15 : vector<8x128xf32>
    %17 = arith.addf %12, %16 : vector<8x128xf32>
    %cst = arith.constant dense<0.000000e+00> : vector<8xf32>
    %18 = vector.multi_reduction <add>, %17, %cst [1] : vector<8x128xf32> to vector<8xf32>
    %19 = vector.shape_cast %18 : vector<8xf32> to vector<8x1xf32>
    %20 = arith.negf %19 : vector<8x1xf32>
    %21 = math.exp %20 : vector<8x1xf32>
    %cst_17 = arith.constant 1.000000e+00 : f32
    %22 = vector.broadcast %cst_17 : f32 to vector<8x1xf32>
    %23 = arith.addf %22, %21 : vector<8x1xf32>
    %24 = arith.divf %22, %23 : vector<8x1xf32>
    %c0_18 = arith.constant 0 : index
    %c0_19 = arith.constant 0 : index
    %25 = vector.load %arg8[%c0_18, %c0_19] : memref<8x1xf32, #tpu.memory_space<vmem>>, vector<8x1xf32>
    tpu.vector_store %arg8[%c0_18, %c0_19], %24 {strides = array<i32>} : memref<8x1xf32, #tpu.memory_space<vmem>>, vector<8x1xf32>,
    return
  }
  func.func @transform_4(%arg0: i32, %arg1: memref<8xi32, #tpu.memory_space<smem>>, %arg2: memref<8xi32, #tpu.memory_space<smem>>, %arg3: memref<8xi32, #tpu.memory_space<smem>>) -> (i32, i32) {
    %c0_i32 = arith.constant 0 : i32
    %c0_i32_0 = arith.constant 0 : i32
    return %arg0, %c0_i32 : i32, i32
  }
}

</mosaic_0001>

<llo_original>
// kernel: tpu_custom_call.1
$region0: #{tpu_custom_call.1}
  #allocation0 [shape = 'u32[]', space=smem, size = 0x4, offset = 0x4, fixed_abs, tag = 'smem constant byte address 0x4 - core index']
  #allocation1 [shape = 'u32[72,128]{1,0:T(1,128)}', space=vmem, size = 0x9000, scoped, tag = 'internal scratch']
  #allocation2 [shape = 'f32[8,128]{1,0:T(8,128)}', space=vmem, size = 0x1000, scoped, tag = 'scratch operand']
  #allocation3 [shape = 'f32[8,128]{1,0:T(8,128)}', space=vmem, size = 0x1000, scoped, tag = 'scratch operand']
  #allocation4 [shape = 'f32[8,128]{1,0:T(8,128)}', space=vmem, size = 0x1000, scoped, tag = 'scratch operand']
  #allocation5 [shape = 'f32[8,128]{1,0:T(8,128)}', space=vmem, size = 0x1000, scoped, tag = 'scratch operand']
  #allocation6 [shape = 'f32[8,128]{1,0:T(8,128)}', space=vmem, size = 0x1000, scoped, tag = 'scratch operand']
  #allocation7 [shape = 'f32[8,128]{1,0:T(8,128)}', space=vmem, size = 0x1000, scoped, tag = 'scratch operand']
  #allocation8 [shape = 's32[6]{0}', space=sflag, size = 0x18, scoped, tag = 'scratch operand']
  #allocation9 [shape = 's32[1]{0}', space=sflag, size = 0x4, scoped, tag = 'scoped memory for tpu_custom_call.1']
  #allocation10 [shape = 'u8[512]{0}', space=smem, size = 0x200, scoped, tag = 'prefetched SMEM operand 0']
  #allocation11 [shape = 'u8[512]{0}', space=smem, size = 0x200, scoped, tag = 'prefetched SMEM operand 1']
  #allocation12 [shape = 'u8[512]{0}', space=smem, size = 0x200, scoped, tag = 'prefetched SMEM operand 2']
  #allocation13 [shape = 's32[]', space=sflag, size = 0x4, offset = 0, fixed_abs, tag = 'sflag constant byte address 0x0 - dummy sync flag']
  #allocation14 [shape = 's32[]', space=sflag, size = 0x4, offset = 0, fixed_abs, tag = 'sflag constant byte address 0x0 - dummy sync flag']
  #allocation15 [shape = 'u32[]', space=smem, size = 0x4, offset = 0x44, fixed_abs, tag = 'smem constant byte address 0x44 - assertion arg 0']
  #allocation16 [shape = 'u32[]', space=smem, size = 0x4, offset = 0x48, fixed_abs, tag = 'smem constant byte address 0x48 - assertion arg 1']
  #allocation17 [shape = 's32[]', space=sflag, size = 0x4, offset = 0, fixed_abs, tag = 'sflag constant byte address 0x0 - dummy sync flag']
  #allocation18 [shape = 's32[]', space=sflag, size = 0x4, offset = 0, fixed_abs, tag = 'sflag constant byte address 0x0 - dummy sync flag']
  #allocation19 [shape = 's32[]', space=sflag, size = 0x4, offset = 0, fixed_abs, tag = 'sflag constant byte address 0x0 - dummy sync flag']
  #allocation20 [shape = 's32[]', space=sflag, size = 0x4, offset = 0, fixed_abs, tag = 'sflag constant byte address 0x0 - dummy sync flag']
  #allocation21 [shape = 's32[]', space=sflag, size = 0x4, offset = 0, fixed_abs, tag = 'sflag constant byte address 0x0 - dummy sync flag']
  #allocation22 [shape = 's32[]', space=sflag, size = 0x4, offset = 0, fixed_abs, tag = 'sflag constant byte address 0x0 - dummy sync flag']
  #allocation23 [shape = 's32[]', space=sflag, size = 0x4, offset = 0, fixed_abs, tag = 'sflag constant byte address 0x0 - dummy sync flag']
  #allocation24 [shape = 's32[]', space=sflag, size = 0x4, offset = 0, fixed_abs, tag = 'sflag constant byte address 0x0 - dummy sync flag']
  #allocation25 [shape = 's32[]', space=sflag, size = 0x4, offset = 0, fixed_abs, tag = 'sflag constant byte address 0x0 - dummy sync flag']
  #allocation26 [shape = 's32[]', space=sflag, size = 0x4, offset = 0, fixed_abs, tag = 'sflag constant byte address 0x0 - dummy sync flag']
  %s0 = inlined_call_operand.hbm [shape: s32[8], index: 0, kind: input, shape index: {}]
  %s1 = inlined_call_operand.hbm [shape: s32[8], index: 1, kind: input, shape index: {}]
  %s2 = inlined_call_operand.vmem [shape: s32[8], index: 2, kind: input, shape index: {}]
  %s3 = inlined_call_operand.hbm [shape: f32[64,128], index: 3, kind: input, shape index: {}]
  %s4 = inlined_call_operand.hbm [shape: f32[64,128], index: 4, kind: input, shape index: {}]
  %s5 = inlined_call_operand.hbm [shape: f32[16,128], index: 5, kind: input, shape index: {}]
  %s6 = inlined_call_operand.hbm [shape: f32[16,128], index: 6, kind: input, shape index: {}]
  %s7 = inlined_call_operand.vmem [shape: f32[8,1], index: 7, kind: output, shape index: {}]
  %s8 = sld [smem:[#allocation0]]
  $region48: #{tpu_custom_call.1} parent=0
    _
  %s10 = ssub.s32 1, %s8
  %s11 = scalar_select 0, %s10, %s8
  %s13 = sshll.u32 %s0, 4
  %s14 = int_to_ptr.hbm [resolvable:$true] %s13
  %16 = dma.hbm_to_smem %s14, 16, [#allocation10], [#allocation9]
  %s18 = sshll.u32 %s1, 4
  %s19 = int_to_ptr.hbm [resolvable:$true] %s18
  %21 = dma.hbm_to_smem %s19, 16, [#allocation11], [#allocation9]
  %s23 = sshll.u32 %s2, 4
  %s24 = int_to_ptr.vmem [resolvable:$true] %s23
  %26 = dma.vmem_to_smem %s24, 16, [#allocation12], [#allocation9]
  %28 = dma.done [#allocation9], 48
  %29 = sfence
  %s30 = smul.u32 0, 8
  loop: start=0, step=1, limit=8
  $region2: #{tpu_custom_call.1} parent=0 // loop_pre_header
    _
  $region3: #{tpu_custom_call.1} parent=0 // loop_header
    %s32 = sphi 0, %s36
    %p33 = scmp.ge.s32.totalorder %s32, 8
  $region4: #{tpu_custom_call.1} parent=0 // loop_header_branch
    %35 = sbr.rel (%p33) target = $region8
  $region5: #{tpu_custom_call.1} parent=0 // loop_body
    %s37 = sadd.s32 %s30, %s32
    %s38 = sld [smem:[#allocation10 + %s37]]
    %s39 = sld [smem:[#allocation11 + %s37]]
    %s40 = sld [smem:[#allocation12 + %s37]]
    %s41 = scalar_lea.hbm %s3, %s38
    %s42 = scalar_lea.vmem [#allocation2], %s32
    // Predicated region
    $region9: #{tpu_custom_call.1} parent=5 // pred_check
      _
    $region10: #{tpu_custom_call.1} parent=5 // pred_check_branch
      %44 = sbr.rel target = $region12
    $region11: #{tpu_custom_call.1} parent=5 // pred_region
      %45 = sst [smem:[#allocation15]] [#allocation14]
      %46 = sst [smem:[#allocation16]] [#allocation13]
    $region12: #{tpu_custom_call.1} parent=5 // pred_fallthru
      _
    %48 = shalt.err (0)
    %s50 = sshll.u32 %s41, 4
    %s51 = int_to_ptr.hbm [resolvable:$true] %s50
    %s52 = sshll.u32 %s42, 4
    %s53 = int_to_ptr.vmem [resolvable:$true] %s52
    %55 = dma.hbm_to_vmem [thread:$0]  %s51, 16, %s53, [#allocation8]
    %s56 = scalar_lea.hbm %s4, %s38
    %s57 = scalar_lea.vmem [#allocation3], %s32
    %s58 = scalar_lea.sflag [#allocation8], 1
    // Predicated region
    $region13: #{tpu_custom_call.1} parent=5 // pred_check
      _
    $region14: #{tpu_custom_call.1} parent=5 // pred_check_branch
      %60 = sbr.rel target = $region16
    $region15: #{tpu_custom_call.1} parent=5 // pred_region
      %61 = sst [smem:[#allocation15]] [#allocation18]
      %62 = sst [smem:[#allocation16]] [#allocation17]
    $region16: #{tpu_custom_call.1} parent=5 // pred_fallthru
      _
    %64 = shalt.err (0)
    %s66 = sshll.u32 %s56, 4
    %s67 = int_to_ptr.hbm [resolvable:$true] %s66
    %s68 = sshll.u32 %s57, 4
    %s69 = int_to_ptr.vmem [resolvable:$true] %s68
    %71 = dma.hbm_to_vmem [thread:$0]  %s67, 16, %s69, %s58
    %s72 = scalar_lea.hbm %s5, %s39
    %s73 = scalar_lea.vmem [#allocation4], %s32
    %s74 = scalar_lea.sflag [#allocation8], 2
    // Predicated region
    $region17: #{tpu_custom_call.1} parent=5 // pred_check
      _
    $region18: #{tpu_custom_call.1} parent=5 // pred_check_branch
      %76 = sbr.rel target = $region20
    $region19: #{tpu_custom_call.1} parent=5 // pred_region
      %77 = sst [smem:[#allocation15]] [#allocation20]
      %78 = sst [smem:[#allocation16]] [#allocation19]
    $region20: #{tpu_custom_call.1} parent=5 // pred_fallthru
      _
    %80 = shalt.err (0)
    %s82 = sshll.u32 %s72, 4
    %s83 = int_to_ptr.hbm [resolvable:$true] %s82
    %s84 = sshll.u32 %s73, 4
    %s85 = int_to_ptr.vmem [resolvable:$true] %s84
    %87 = dma.hbm_to_vmem [thread:$0]  %s83, 16, %s85, %s74
    %s88 = scalar_lea.hbm %s6, %s39
    %s89 = scalar_lea.vmem [#allocation5], %s32
    %s90 = scalar_lea.sflag [#allocation8], 3
    // Predicated region
    $region21: #{tpu_custom_call.1} parent=5 // pred_check
      _
    $region22: #{tpu_custom_call.1} parent=5 // pred_check_branch
      %92 = sbr.rel target = $region24
    $region23: #{tpu_custom_call.1} parent=5 // pred_region
      %93 = sst [smem:[#allocation15]] [#allocation22]
      %94 = sst [smem:[#allocation16]] [#allocation21]
    $region24: #{tpu_custom_call.1} parent=5 // pred_fallthru
      _
    %96 = shalt.err (0)
    %s98 = sshll.u32 %s88, 4
    %s99 = int_to_ptr.hbm [resolvable:$true] %s98
    %s100 = sshll.u32 %s89, 4
    %s101 = int_to_ptr.vmem [resolvable:$true] %s100
    %103 = dma.hbm_to_vmem [thread:$0]  %s99, 16, %s101, %s90
    %s104 = scalar_lea.hbm %s3, %s40
    %s105 = scalar_lea.vmem [#allocation6], %s32
    %s106 = scalar_lea.sflag [#allocation8], 4
    // Predicated region
    $region25: #{tpu_custom_call.1} parent=5 // pred_check
      _
    $region26: #{tpu_custom_call.1} parent=5 // pred_check_branch
      %108 = sbr.rel target = $region28
    $region27: #{tpu_custom_call.1} parent=5 // pred_region
      %109 = sst [smem:[#allocation15]] [#allocation24]
      %110 = sst [smem:[#allocation16]] [#allocation23]
    $region28: #{tpu_custom_call.1} parent=5 // pred_fallthru
      _
    %112 = shalt.err (0)
    %s114 = sshll.u32 %s104, 4
    %s115 = int_to_ptr.hbm [resolvable:$true] %s114
    %s116 = sshll.u32 %s105, 4
    %s117 = int_to_ptr.vmem [resolvable:$true] %s116
    %119 = dma.hbm_to_vmem [thread:$0]  %s115, 16, %s117, %s106
    %s120 = scalar_lea.hbm %s4, %s40
    %s121 = scalar_lea.vmem [#allocation7], %s32
    %s122 = scalar_lea.sflag [#allocation8], 5
    // Predicated region
    $region29: #{tpu_custom_call.1} parent=5 // pred_check
      _
    $region30: #{tpu_custom_call.1} parent=5 // pred_check_branch
      %124 = sbr.rel target = $region32
    $region31: #{tpu_custom_call.1} parent=5 // pred_region
      %125 = sst [smem:[#allocation15]] [#allocation26]
      %126 = sst [smem:[#allocation16]] [#allocation25]
    $region32: #{tpu_custom_call.1} parent=5 // pred_fallthru
      _
    %128 = shalt.err (0)
    %s130 = sshll.u32 %s120, 4
    %s131 = int_to_ptr.hbm [resolvable:$true] %s130
    %s132 = sshll.u32 %s121, 4
    %s133 = int_to_ptr.vmem [resolvable:$true] %s132
    %135 = dma.hbm_to_vmem [thread:$0]  %s131, 16, %s133, %s122
  $region6: #{tpu_custom_call.1} parent=0 // loop_footer
    %s36 = sadd.s32 1, %s32
  $region7: #{tpu_custom_call.1} parent=0 // loop_footer_branch
    %31 = sbr.rel target = $region3
  $region8: #{tpu_custom_call.1} parent=0 // loop_exit
    _
  loop: start=0, step=1, limit=8
  $region33: #{tpu_custom_call.1} parent=0 // loop_pre_header
    _
  $region34: #{tpu_custom_call.1} parent=0 // loop_header
    %s137 = sphi 0, %s141
    %p138 = scmp.ge.s32.totalorder %s137, 8
  $region35: #{tpu_custom_call.1} parent=0 // loop_header_branch
    %140 = sbr.rel (%p138) target = $region39
  $region36: #{tpu_custom_call.1} parent=0 // loop_body
    %s142 = sadd.s32 %s30, %s137
    %s143 = sld [smem:[#allocation10 + %s142]]
    %s144 = sld [smem:[#allocation11 + %s142]]
    %s145 = sld [smem:[#allocation12 + %s142]]
    %147 = dma.done [#allocation8], 16
    %s148 = scalar_lea.sflag [#allocation8], 1
    %150 = dma.done %s148, 16
    %s151 = scalar_lea.sflag [#allocation8], 2
    %153 = dma.done %s151, 16
    %s154 = scalar_lea.sflag [#allocation8], 3
    %156 = dma.done %s154, 16
    %s157 = scalar_lea.sflag [#allocation8], 4
    %159 = dma.done %s157, 16
    %s160 = scalar_lea.sflag [#allocation8], 5
    %162 = dma.done %s160, 16
  $region37: #{tpu_custom_call.1} parent=0 // loop_footer
    %s141 = sadd.s32 1, %s137
  $region38: #{tpu_custom_call.1} parent=0 // loop_footer_branch
    %136 = sbr.rel target = $region34
  $region39: #{tpu_custom_call.1} parent=0 // loop_exit
    _
  %v163 = vld [vmem:[#allocation2] sm:$0xff]
  %v164 = vld [vmem:[#allocation3] sm:$0xff]
  %v165 = vld [vmem:[#allocation4] sm:$0xff]
  %v166 = vld [vmem:[#allocation5] sm:$0xff]
  %v167 = vld [vmem:[#allocation6] sm:$0xff]
  %v168 = vld [vmem:[#allocation7] sm:$0xff]
  %v169 = vmul.f32 %v165, %v167
  %v170 = vmul.f32 %v166, %v168
  %v171 = vadd.f32 %v169, %v170
  %v172 = vmul.f32 %v163, %v171
  %v173 = vmul.f32 %v165, %v168
  %v174 = vmul.f32 %v166, %v167
  %v175 = vsub.f32 %v173, %v174
  %v176 = vmul.f32 %v164, %v175
  %v177 = vadd.f32 %v172, %v176
  %178 = vadd.xlane.f32.xlu0 %v177
  %v179 = vpop.xlane.xlu0 %178
  %v180 = vxor.u32 %v179, 2147483648
  %v181 = vmul.f32 %v180, 1.442695
  %v182 = vpow.pop %v181
  %v183 = vadd.f32 %v182, 1.0
  %v184 = vrcp.pop %v183
  %v185 = vmul.f32 %v183, %v184
  %v186 = vsub.f32 1.0, %v185
  %v187 = vmul.f32 %v184, %v186
  %v188 = vadd.f32 %v184, %v187
  %vm189 = vweird.f32 %v183
  %vm190 = vweird.f32 %v184
  %vm191 = vmor %vm189, %vm190
  %v192 = vsel %vm191, %v184, %v188
  %v193 = vand.u32 2147483647, %v183
  %vm194 = vcmp.eq.f32.partialorder %v193, 8.507059e+37
  %v195 = vand.u32 %v183, 2147483648
  %v196 = vor.u32 1.1754944e-38, %v195
  %v197 = vsel %vm194, %v196, %v192
  %v198 = vmul.f32 1.0, %v197
  %vm199 = vcmask 7168
  %200 = vst.msk [vmem:[%s7] sm:$0xff] %vm199, %v198
  // Predicated region
  $region40: #{tpu_custom_call.1} parent=0 // pred_check
    _
  $region41: #{tpu_custom_call.1} parent=0 // pred_check_branch
    %202 = sbr.rel (0) target = $region43
  $region42: #{tpu_custom_call.1} parent=0 // pred_region
    _
  $region43: #{tpu_custom_call.1} parent=0 // pred_fallthru
    _
  // Predicated region
  $region44: #{tpu_custom_call.1} parent=0 // pred_check
    _
  $region45: #{tpu_custom_call.1} parent=0 // pred_check_branch
    %204 = sbr.rel (0) target = $region47
  $region46: #{tpu_custom_call.1} parent=0 // pred_region
    _
  $region47: #{tpu_custom_call.1} parent=0 // pred_fallthru
    _
  %205 = vsyncmov [#allocation8]
  %s206 = vpop.sfrf %205
  %p207 = scmp.eq.s32.totalorder %s206, 0
  %p208 = pneg %p207
  %210 = shalt.err (%p208)
  %s211 = scalar_lea.sflag [#allocation8], 1
  %212 = vsyncmov %s211
  %s213 = vpop.sfrf %212
  %p214 = scmp.eq.s32.totalorder %s213, 0
  %p215 = pneg %p214
  %217 = shalt.err (%p215)
  %s218 = scalar_lea.sflag [#allocation8], 2
  %219 = vsyncmov %s218
  %s220 = vpop.sfrf %219
  %p221 = scmp.eq.s32.totalorder %s220, 0
  %p222 = pneg %p221
  %224 = shalt.err (%p222)
  %s225 = scalar_lea.sflag [#allocation8], 3
  %226 = vsyncmov %s225
  %s227 = vpop.sfrf %226
  %p228 = scmp.eq.s32.totalorder %s227, 0
  %p229 = pneg %p228
  %231 = shalt.err (%p229)
  %s232 = scalar_lea.sflag [#allocation8], 4
  %233 = vsyncmov %s232
  %s234 = vpop.sfrf %233
  %p235 = scmp.eq.s32.totalorder %s234, 0
  %p236 = pneg %p235
  %238 = shalt.err (%p236)
  %s239 = scalar_lea.sflag [#allocation8], 5
  %240 = vsyncmov %s239
  %s241 = vpop.sfrf %240
  %p242 = scmp.eq.s32.totalorder %s241, 0
  %p243 = pneg %p242
  %245 = shalt.err (%p243)

</llo_original>
